<compile_context>
chip_gen: v5e
topology: v5e:2x2
jax: 0.10.0
libtpu: 0.0.40
codegen_flags: <defaults>
</compile_context>

<pallas_src>
import math

import jax
import jax.numpy as jnp
from jax.experimental import pallas as pl
from jax.experimental.pallas import tpu as pltpu


def _round_up(v, m):
    return ((v + m - 1) // m) * m


def _mlp_fused_kernel(x_ref, w_ref, gb_ref, o_ref, h_ref, *,
                      eps: float = 1e-5, slope: float = 0.05):
    """One grid step == one layer.

    x_ref : (N, D)       padded input (constant index map -> fetched once)
    w_ref : (1, D, D)    this layer's weight tile (streamed / double-buffered)
    gb_ref: (1, 2, D)    row 0 = gamma, row 1 = beta for this layer
    o_ref : (N, D)       padded output (written only on the last layer)
    h_ref : (N, D) f32   persistent VMEM scratch holding the running activation
    """
    l = pl.program_id(0)
    last = pl.num_programs(0) - 1

    @pl.when(l == 0)
    def _():
        h_ref[...] = x_ref[...].astype(jnp.float32)

    h = h_ref[...]
    w = w_ref[0]                       # (D, D)
    gb = gb_ref[0]                     # (2, D)
    g = gb[0:1, :]                     # (1, D)
    bt = gb[1:2, :]                    # (1, D)

    # Linear (MXU matmul, f32 accumulation).  Bias omitted: exactly cancelled
    # by the training-mode BatchNorm mean subtraction below.
    y = jnp.dot(h.astype(w.dtype), w, preferred_element_type=jnp.float32)

    # BatchNorm1d with batch statistics, folded into one scale/shift (f32).
    mean = jnp.mean(y, axis=0, keepdims=True)
    d = y - mean
    var = jnp.mean(d * d, axis=0, keepdims=True)          # biased variance
    scale = g * jax.lax.rsqrt(var + eps)                   # (1, D)
    shift = bt - mean * scale                              # (1, D)
    y = y * scale + shift

    @pl.when(l < last)
    def _():
        # LeakyReLU(0.05) on all but the final layer; feed the next grid step.
        h_ref[...] = jnp.where(y >= 0.0, y, slope * y)

    @pl.when(l == last)
    def _():
        o_ref[...] = y.astype(o_ref.dtype)


def mlp_forward(x, params, *, weight_dtype=jnp.float32):
    """Run the whole MLP as one Pallas call with a sequential layer-axis grid.

    params: list of (w_t (din, dout), b (1, dout), gamma (1, dout), beta (1, dout)).
    The Linear bias `b` is intentionally ignored (cancelled by training-mode BN).
    """
    n_total = len(params)
    n, in_dim = x.shape
    out_dim = params[-1][0].shape[1]

    # Pad every feature dim to a common lane-dense width (multiple of 128).
    d = _round_up(max([in_dim, out_dim] + [w.shape[1] for (w, _, _, _) in params]),
                  128)

    # Stacked, zero-padded parameters.  Padded activation columns are exactly
    # zero through every layer: zero weight rows/cols -> y == 0 there, and
    # BN with beta == 0 maps them back to 0 (LeakyReLU(0) == 0).
    w_stack = jnp.zeros((n_total, d, d), jnp.float32)
    gb_stack = jnp.zeros((n_total, 2, d), jnp.float32)
    for i, (w_t, _b, g, bt) in enumerate(params):
        din, dout = w_t.shape
        w_stack = w_stack.at[i, :din, :dout].set(w_t)
        gb_stack = gb_stack.at[i, 0, :dout].set(g[0])
        gb_stack = gb_stack.at[i, 1, :dout].set(bt[0])
    w_stack = w_stack.astype(weight_dtype)

    x_pad = jnp.zeros((n, d), jnp.float32).at[:, :in_dim].set(x)

    itemsize = jnp.dtype(weight_dtype).itemsize
    # Footprint: x + 2x double-buffered weight tile + 2x gamma/beta tile
    # + output + persistent h scratch; 2x headroom, clamped for v7x (64 MiB VMEM).
    footprint = (4 * n * d                       # x
                 + 2 * itemsize * d * d          # weight tile, double-buffered
                 + 2 * 4 * 2 * d                 # gamma/beta tile, double-buffered
                 + 4 * n * d                     # output
                 + 4 * n * d)                    # h scratch
    vmem_limit = int(min(max(2 * footprint, 8 << 20), 48 << 20))

    flops = 2 * n * d * d * n_total
    transcendentals = n_total * d                # one rsqrt per feature per layer
    bytes_accessed = (4 * (x_pad.size + n * d) + itemsize * w_stack.size
                      + 4 * gb_stack.size)

    out_pad = pl.pallas_call(
        _mlp_fused_kernel,
        out_shape=jax.ShapeDtypeStruct((n, d), jnp.float32),
        grid_spec=pltpu.PrefetchScalarGridSpec(
            num_scalar_prefetch=0,
            grid=(n_total,),
            in_specs=[
                pl.BlockSpec((n, d), lambda l: (0, 0)),        # x (fetched once)
                pl.BlockSpec((1, d, d), lambda l: (l, 0, 0)),  # weight stream
                pl.BlockSpec((1, 2, d), lambda l: (l, 0, 0)),  # gamma/beta stream
            ],
            out_specs=pl.BlockSpec((n, d), lambda l: (0, 0)),
            scratch_shapes=[pltpu.VMEM((n, d), jnp.float32)],  # running activation
        ),
        compiler_params=pltpu.CompilerParams(
            dimension_semantics=("arbitrary",),                # layers are sequential
            vmem_limit_bytes=vmem_limit),
        cost_estimate=pl.CostEstimate(
            flops=flops,
            transcendentals=transcendentals,
            bytes_accessed=bytes_accessed),
    )(x_pad, w_stack, gb_stack)

    return out_pad[:, :out_dim]


def init_mlp_params(key, in_dim, n_hid, out_dim, n_layer):
    """Deterministic parameters matching the PyTorch module's shapes/inits."""
    dims = [(in_dim, n_hid)] + [(n_hid, n_hid) for _ in range(n_layer - 1)] \
           + [(n_hid, out_dim)]
    params = []
    for (fan_in, fan_out) in dims:
        key, kw, kb = jax.random.split(key, 3)
        # xavier_uniform_ on (out, in) weight -> same bound for (in, out)
        bound_w = math.sqrt(6.0 / (fan_in + fan_out))
        w_t = jax.random.uniform(kw, (fan_in, fan_out), jnp.float32,
                                 minval=-bound_w, maxval=bound_w)
        # nn.Linear default bias init: U(-1/sqrt(fan_in), 1/sqrt(fan_in))
        bound_b = 1.0 / math.sqrt(fan_in)
        b = jax.random.uniform(kb, (1, fan_out), jnp.float32,
                               minval=-bound_b, maxval=bound_b)
        gamma = jnp.ones((1, fan_out), jnp.float32)
        beta = jnp.zeros((1, fan_out), jnp.float32)
        params.append((w_t, b, gamma, beta))
    return params


def mlp_reference(x, params):
    """Pure-JAX reference (keeps the Linear bias, which BN cancels exactly)."""
    eps, slope = 1e-5, 0.05
    n_layer = len(params) - 1

    def layer(h, p, lrelu):
        w_t, b, g, bt = p
        y = h @ w_t + b
        mean = jnp.mean(y, axis=0, keepdims=True)
        var = jnp.mean((y - mean) ** 2, axis=0, keepdims=True)
        y = (y - mean) / jnp.sqrt(var + eps) * g + bt
        return jnp.where(y >= 0, y, slope * y) if lrelu else y

    h = x
    for i in range(n_layer):
        h = layer(h, params[i], True)
    return layer(h, params[-1], False)


if __name__ == "__main__":
    # Small shapes consistent with the module's forward: x is (batch, in_dim).
    batch, in_dim, n_hid, out_dim, n_layer = 8, 16, 32, 8, 2

    key = jax.random.PRNGKey(0)
    key_x, key_p = jax.random.split(key)
    x = jax.random.normal(key_x, (batch, in_dim), jnp.float32)
    params = init_mlp_params(key_p, in_dim, n_hid, out_dim, n_layer)

    out = mlp_forward(x, params)
    out = jax.block_until_ready(out)

    ref = mlp_reference(x, params)
    assert out.shape == (batch, out_dim)
    assert jnp.allclose(out, ref, atol=1e-4, rtol=1e-4), "mismatch vs reference"

    print("KERNEL_OK")
</pallas_src>

<mosaic_0001>
module attributes {stable_mosaic.version = 11 : i64} {
  func.func @_mlp_fused_kernel(%arg0: i32, %arg1: memref<8x128xf32, #tpu.memory_space<vmem>>, %arg2: memref<1x128x128xf32, #tpu.memory_space<vmem>>, %arg3: memref<1x2x128xf32, #tpu.memory_space<vmem>>, %arg4: memref<8x128xf32, #tpu.memory_space<vmem>>, %arg5: memref<8x128xf32, #tpu.memory_space<vmem>>) attributes {dimension_semantics = [#tpu.dimension_semantics<arbitrary>], iteration_bounds = array<i64: 3>, scalar_prefetch = 0 : i64, scratch_operands = 1 : i64, tpu.core_type = #tpu.core_type<tc>, window_params = [{pipeline_mode = #tpu.pipeline_mode<synchronous>, transform_indices = @transform_0, window_bounds = array<i64: 8, 128>}, {transform_indices = @transform_1, window_bounds = array<i64: 1, 128, 128>}, {transform_indices = @transform_2, window_bounds = array<i64: 1, 2, 128>}, {pipeline_mode = #tpu.pipeline_mode<synchronous>, transform_indices = @transform_3, window_bounds = array<i64: 8, 128>}]} {
    %c0_i32 = arith.constant 0 : i32
    %0 = arith.cmpi eq, %arg0, %c0_i32 : i32
    %1 = arith.extui %0 : i1 to i32
    %c0_i32_0 = arith.constant 0 : i32
    %2 = arith.cmpi ne, %1, %c0_i32_0 : i32
    scf.if %2 {
      %c0_16 = arith.constant 0 : index
      %c0_17 = arith.constant 0 : index
      %38 = vector.load %arg1[%c0_16, %c0_17] : memref<8x128xf32, #tpu.memory_space<vmem>>, vector<8x128xf32>
      %c0_18 = arith.constant 0 : index
      %c0_19 = arith.constant 0 : index
      %39 = vector.load %arg5[%c0_18, %c0_19] : memref<8x128xf32, #tpu.memory_space<vmem>>, vector<8x128xf32>
      tpu.vector_store %arg5[%c0_18, %c0_19], %38 {strides = array<i32>} : memref<8x128xf32, #tpu.memory_space<vmem>>, vector<8x128xf32>,
    } else {
    }
    %c0 = arith.constant 0 : index
    %c0_1 = arith.constant 0 : index
    %3 = vector.load %arg5[%c0, %c0_1] : memref<8x128xf32, #tpu.memory_space<vmem>>, vector<8x128xf32>
    %c0_2 = arith.constant 0 : index
    %c0_3 = arith.constant 0 : index
    %c0_4 = arith.constant 0 : index
    %4 = vector.load %arg2[%c0_2, %c0_3, %c0_4] : memref<1x128x128xf32, #tpu.memory_space<vmem>>, vector<1x128x128xf32>
    %5 = vector.shape_cast %4 : vector<1x128x128xf32> to vector<128x128xf32>
    %c0_5 = arith.constant 0 : index
    %c0_6 = arith.constant 0 : index
    %c0_7 = arith.constant 0 : index
    %6 = vector.load %arg3[%c0_5, %c0_6, %c0_7] : memref<1x2x128xf32, #tpu.memory_space<vmem>>, vector<1x2x128xf32>
    %7 = vector.shape_cast %6 : vector<1x2x128xf32> to vector<2x128xf32>
    %8 = vector.extract_strided_slice %7 {offsets = [0, 0], sizes = [1, 128], strides = [1, 1]} : vector<2x128xf32> to vector<1x128xf32>
    %9 = vector.extract_strided_slice %7 {offsets = [1, 0], sizes = [1, 128], strides = [1, 1]} : vector<2x128xf32> to vector<1x128xf32>
    %cst = arith.constant dense<0.000000e+00> : vector<8x128xf32>
    %10 = tpu.matmul %3, %5, %cst {dimension_numbers = #tpu.dot_dimension_numbers<[1], [0], [0], [1], [0, 0, 1, 1], [], []>} : vector<8x128xf32>, vector<128x128xf32>, vector<8x128xf32> -> vector<8x128xf32>
    %cst_8 = arith.constant dense<0.000000e+00> : vector<128xf32>
    %11 = vector.multi_reduction <add>, %10, %cst_8 [0] : vector<8x128xf32> to vector<128xf32>
    %12 = vector.shape_cast %11 : vector<128xf32> to vector<1x128xf32>
    %cst_9 = arith.constant 8.000000e+00 : f32
    %13 = vector.broadcast %cst_9 : f32 to vector<1x128xf32>
    %14 = arith.divf %12, %13 : vector<1x128xf32>
    %15 = vector.broadcast %14 : vector<1x128xf32> to vector<8x128xf32>
    %16 = arith.subf %10, %15 : vector<8x128xf32>
    %17 = arith.mulf %16, %16 : vector<8x128xf32>
    %cst_10 = arith.constant dense<0.000000e+00> : vector<128xf32>
    %18 = vector.multi_reduction <add>, %17, %cst_10 [0] : vector<8x128xf32> to vector<128xf32>
    %19 = vector.shape_cast %18 : vector<128xf32> to vector<1x128xf32>
    %cst_11 = arith.constant 8.000000e+00 : f32
    %20 = vector.broadcast %cst_11 : f32 to vector<1x128xf32>
    %21 = arith.divf %19, %20 : vector<1x128xf32>
    %cst_12 = arith.constant 9.99999974E-6 : f32
    %22 = vector.broadcast %cst_12 : f32 to vector<1x128xf32>
    %23 = arith.addf %21, %22 : vector<1x128xf32>
    %24 = math.rsqrt %23 : vector<1x128xf32>
    %25 = arith.mulf %8, %24 : vector<1x128xf32>
    %26 = arith.mulf %14, %25 : vector<1x128xf32>
    %27 = arith.subf %9, %26 : vector<1x128xf32>
    %28 = vector.broadcast %25 : vector<1x128xf32> to vector<8x128xf32>
    %29 = arith.mulf %10, %28 : vector<8x128xf32>
    %30 = vector.broadcast %27 : vector<1x128xf32> to vector<8x128xf32>
    %31 = arith.addf %29, %30 : vector<8x128xf32>
    %c2_i32 = arith.constant 2 : i32
    %32 = arith.cmpi slt, %arg0, %c2_i32 : i32
    %33 = arith.extui %32 : i1 to i32
    %c0_i32_13 = arith.constant 0 : i32
    %34 = arith.cmpi ne, %33, %c0_i32_13 : i32
    scf.if %34 {
      %cst_16 = arith.constant 0.000000e+00 : f32
      %38 = vector.broadcast %cst_16 : f32 to vector<8x128xf32>
      %39 = arith.cmpf oge, %31, %38 : vector<8x128xf32>
      %cst_17 = arith.constant 5.000000e-02 : f32
      %40 = vector.broadcast %cst_17 : f32 to vector<8x128xf32>
      %41 = arith.mulf %40, %31 : vector<8x128xf32>
      %42 = arith.select %39, %31, %41 : vector<8x128xi1>, vector<8x128xf32>
      %c0_18 = arith.constant 0 : index
      %c0_19 = arith.constant 0 : index
      %43 = vector.load %arg5[%c0_18, %c0_19] : memref<8x128xf32, #tpu.memory_space<vmem>>, vector<8x128xf32>
      tpu.vector_store %arg5[%c0_18, %c0_19], %42 {strides = array<i32>} : memref<8x128xf32, #tpu.memory_space<vmem>>, vector<8x128xf32>,
    } else {
    }
    %c2_i32_14 = arith.constant 2 : i32
    %35 = arith.cmpi eq, %arg0, %c2_i32_14 : i32
    %36 = arith.extui %35 : i1 to i32
    %c0_i32_15 = arith.constant 0 : i32
    %37 = arith.cmpi ne, %36, %c0_i32_15 : i32
    scf.if %37 {
      %c0_16 = arith.constant 0 : index
      %c0_17 = arith.constant 0 : index
      %38 = vector.load %arg4[%c0_16, %c0_17] : memref<8x128xf32, #tpu.memory_space<vmem>>, vector<8x128xf32>
      tpu.vector_store %arg4[%c0_16, %c0_17], %31 {strides = array<i32>} : memref<8x128xf32, #tpu.memory_space<vmem>>, vector<8x128xf32>,
    } else {
    }
    return
  }
  func.func @transform_0(%arg0: i32) -> (i32, i32) {
    %c0_i32 = arith.constant 0 : i32
    %c0_i32_0 = arith.constant 0 : i32
    %c0_i32_1 = arith.constant 0 : i32
    return %c0_i32, %c0_i32_0 : i32, i32
  }
  func.func @transform_1(%arg0: i32) -> (i32, i32, i32) {
    %c0_i32 = arith.constant 0 : i32
    %c0_i32_0 = arith.constant 0 : i32
    %c0_i32_1 = arith.constant 0 : i32
    return %arg0, %c0_i32, %c0_i32_0 : i32, i32, i32
  }
  func.func @transform_2(%arg0: i32) -> (i32, i32, i32) {
    %c0_i32 = arith.constant 0 : i32
    %c0_i32_0 = arith.constant 0 : i32
    %c0_i32_1 = arith.constant 0 : i32
    return %arg0, %c0_i32, %c0_i32_0 : i32, i32, i32
  }
  func.func @transform_3(%arg0: i32) -> (i32, i32) {
    %c0_i32 = arith.constant 0 : i32
    %c0_i32_0 = arith.constant 0 : i32
    %c0_i32_1 = arith.constant 0 : i32
    return %c0_i32, %c0_i32_0 : i32, i32
  }
}

</mosaic_0001>

<llo_original>
// kernel: tpu_custom_call.1
$region0: #{tpu_custom_call.1}
  #allocation0 [shape = 'u32[]', space=smem, size = 0x4, offset = 0x4, fixed_abs, tag = 'smem constant byte address 0x4 - core index']
  #allocation1 [shape = 'u32[72,128]{1,0:T(1,128)}', space=vmem, size = 0x9000, scoped, tag = 'internal scratch']
  #allocation2 [shape = 'f32[8,128]{1,0:T(8,128)}', space=vmem, size = 0x1000, scoped, tag = 'scratch operand']
  %s0 = inlined_call_operand.hbm [shape: f32[8,128], index: 0, kind: input, shape index: {}]
  %s1 = inlined_call_operand.hbm [shape: f32[3,128,128], index: 1, kind: input, shape index: {}]
  %s2 = inlined_call_operand.hbm [shape: f32[3,2,128], index: 2, kind: input, shape index: {}]
  %s3 = inlined_call_operand.hbm [shape: f32[8,128], index: 3, kind: output, shape index: {}]
  %s4 = sld [smem:[#allocation0]]
  $region69: #{tpu_custom_call.1} parent=0
    _
  %s6 = ssub.s32 1, %s4
  %s7 = scalar_select 0, %s6, %s4
  $region1: #{tpu_custom_call.1} parent=0
    #allocation3 [shape = 'u8[4096]{0}', space=vmem, size = 0x1000, scoped, tag = 'input window, operand 0, single buffered']
    #allocation4 [shape = 's32[2]{0}', space=sflag, size = 0x8, scoped, tag = 'scoped memory for tpu_custom_call.1']
    #allocation5 [shape = 's32[2]{0}', space=sflag, size = 0x8, scoped, tag = 'scoped memory for tpu_custom_call.1']
    #allocation6 [shape = 'u8[131072]{0}', space=vmem, size = 0x20000, scoped, tag = 'input window, operand 1']
    #allocation7 [shape = 's32[2]{0}', space=sflag, size = 0x8, scoped, tag = 'scoped memory for tpu_custom_call.1']
    #allocation8 [shape = 'u8[2048]{0}', space=vmem, size = 0x800, scoped, tag = 'input window, operand 2']
    #allocation9 [shape = 'u8[4096]{0}', space=vmem, size = 0x1000, scoped, tag = 'output window, operand 0, single buffered']
    %8 = vsyncpa [#allocation4], 0
    %9 = vsyncpa [#allocation7], 0
    %s10 = scalar_lea.sflag [#allocation7], 1
    %11 = vsyncpa %s10, 0
    %12 = vsyncpa [#allocation5], 0
    loop: start=0, step=1, limit=5
    $region2: #{tpu_custom_call.1} parent=1 // loop_pre_header
      _
    $region3: #{tpu_custom_call.1} parent=1 // loop_header
      %s14 = sphi 0, %s18
      %p15 = scmp.ge.s32.totalorder %s14, 5
      %s22 = sphi 0, %s22
      %s24 = sphi 0, %s22
      %s25 = sphi 0, %s24
      %s39 = sphi 0, %s25
      %s45 = sphi 0, %s47
      %s48 = sphi 0, %s45
      %s49 = sphi 0, %s48
      %s65 = sphi 0, %s49
      %s71 = sphi 0, %s73
      %s74 = sphi 0, %s71
      %s75 = sphi 0, %s74
      %s91 = sphi 0, %s75
      %s95 = sphi 0, %s95
      %s97 = sphi 0, %s95
      %s98 = sphi 0, %s97
      %s112 = sphi 0, %s98
    $region4: #{tpu_custom_call.1} parent=1 // loop_header_branch
      %17 = sbr.rel (%p15) target = $region8
    $region5: #{tpu_custom_call.1} parent=1 // loop_body
      %s19 = ssub.s32 %s14, 1
      %s20 = ssub.s32 %s14, 2
      %s21 = sadd.s32 %s14, 1
      %s23 = sadd.s32 %s22, 1
      %p26 = scmp.eq.s32.totalorder %s14, 2
      %p27 = scmp.ne.s32.totalorder %s22, %s24
      %p28 = scmp.eq.s32.totalorder %s14, 0
      %p29 = por %p27, %p28
      %p30 = scmp.ne.s32.totalorder %s22, %s24
      %p31 = scmp.eq.s32.totalorder %s19, 2
      %p32 = por %p30, %p31
      %p33 = scmp.ne.s32.totalorder %s24, %s25
      %p34 = scmp.eq.s32.totalorder %s19, 0
      %p35 = por %p33, %p34
      %p36 = scmp.ne.s32.totalorder %s24, %s25
      %p37 = scmp.eq.s32.totalorder %s20, 2
      %p38 = por %p36, %p37
      %p40 = scmp.ne.s32.totalorder %s25, %s39
      %p41 = scmp.eq.s32.totalorder %s20, 0
      %p42 = por %p40, %p41
      %s43 = ssub.s32 %s14, %s21
      %p44 = scmp.eq.s32.totalorder %s43, 0
      %s46 = sadd.s32 %s45, 1
      %s47 = scalar_select %p44, %s45, %s46
      %p50 = pneg %p44
      %p51 = scmp.eq.s32.totalorder %s14, 2
      %p52 = por %p50, %p51
      %p53 = scmp.ne.s32.totalorder %s45, %s48
      %p54 = scmp.eq.s32.totalorder %s14, 0
      %p55 = por %p53, %p54
      %p56 = scmp.ne.s32.totalorder %s45, %s48
      %p57 = scmp.eq.s32.totalorder %s19, 2
      %p58 = por %p56, %p57
      %p59 = scmp.ne.s32.totalorder %s48, %s49
      %p60 = scmp.eq.s32.totalorder %s19, 0
      %p61 = por %p59, %p60
      %p62 = scmp.ne.s32.totalorder %s48, %s49
      %p63 = scmp.eq.s32.totalorder %s20, 2
      %p64 = por %p62, %p63
      %p66 = scmp.ne.s32.totalorder %s49, %s65
      %p67 = scmp.eq.s32.totalorder %s20, 0
      %p68 = por %p66, %p67
      %s69 = ssub.s32 %s14, %s21
      %p70 = scmp.eq.s32.totalorder %s69, 0
      %s72 = sadd.s32 %s71, 1
      %s73 = scalar_select %p70, %s71, %s72
      %p76 = pneg %p70
      %p77 = scmp.eq.s32.totalorder %s14, 2
      %p78 = por %p76, %p77
      %p79 = scmp.ne.s32.totalorder %s71, %s74
      %p80 = scmp.eq.s32.totalorder %s14, 0
      %p81 = por %p79, %p80
      %p82 = scmp.ne.s32.totalorder %s71, %s74
      %p83 = scmp.eq.s32.totalorder %s19, 2
      %p84 = por %p82, %p83
      %p85 = scmp.ne.s32.totalorder %s74, %s75
      %p86 = scmp.eq.s32.totalorder %s19, 0
      %p87 = por %p85, %p86
      %p88 = scmp.ne.s32.totalorder %s74, %s75
      %p89 = scmp.eq.s32.totalorder %s20, 2
      %p90 = por %p88, %p89
      %p92 = scmp.ne.s32.totalorder %s75, %s91
      %p93 = scmp.eq.s32.totalorder %s20, 0
      %p94 = por %p92, %p93
      %s96 = sadd.s32 %s95, 1
      %p99 = scmp.eq.s32.totalorder %s14, 2
      %p100 = scmp.ne.s32.totalorder %s95, %s97
      %p101 = scmp.eq.s32.totalorder %s14, 0
      %p102 = por %p100, %p101
      %p103 = scmp.ne.s32.totalorder %s95, %s97
      %p104 = scmp.eq.s32.totalorder %s19, 2
      %p105 = por %p103, %p104
      %p106 = scmp.ne.s32.totalorder %s97, %s98
      %p107 = scmp.eq.s32.totalorder %s19, 0
      %p108 = por %p106, %p107
      %p109 = scmp.ne.s32.totalorder %s97, %s98
      %p110 = scmp.eq.s32.totalorder %s20, 2
      %p111 = por %p109, %p110
      %p113 = scmp.ne.s32.totalorder %s98, %s112
      %p114 = scmp.eq.s32.totalorder %s20, 0
      %p115 = por %p113, %p114
      %p116 = scmp.le.s32.totalorder 1, %s14
      %p117 = scmp.lt.s32.totalorder %s14, 4
      %p118 = pnand %p116, %p117
      %p119 = pneg %p118
      // Predicated region
      $region9: #{tpu_custom_call.1} parent=5 // pred_check
        _
      $region10: #{tpu_custom_call.1} parent=5 // pred_check_branch
        %121 = sbr.rel (%p118) target = $region12
      $region11: #{tpu_custom_call.1} parent=5 // pred_region
        %s122 = ssub.s32 %s14, 1
        // Predicated region
        $region13: #{tpu_custom_call.1} parent=11 // pred_check
          %p123 = pneg %p35
        $region14: #{tpu_custom_call.1} parent=11 // pred_check_branch
          %125 = sbr.rel (%p123) target = $region16
        $region15: #{tpu_custom_call.1} parent=11 // pred_region
          %127 = vsyncadd [#allocation4], 0
          %s129 = sshll.u32 %s0, 4
          %s130 = int_to_ptr.hbm [resolvable:$true] %s129
          %s131 = sshll.u32 [#allocation3], 4
          %s132 = int_to_ptr.vmem [resolvable:$true] %s131
          %134 = dma.hbm_to_vmem [thread:$0]  %s130, 128, %s132, [#allocation4]
        $region16: #{tpu_custom_call.1} parent=11 // pred_fallthru
          _
      $region12: #{tpu_custom_call.1} parent=5 // pred_fallthru
        _
      %p135 = scmp.lt.s32.totalorder %s14, 3
      // Predicated region
      $region17: #{tpu_custom_call.1} parent=5 // pred_check
        %p136 = pneg %p135
      $region18: #{tpu_custom_call.1} parent=5 // pred_check_branch
        %138 = sbr.rel (%p136) target = $region20
      $region19: #{tpu_custom_call.1} parent=5 // pred_region
        // Predicated region
        $region21: #{tpu_custom_call.1} parent=19 // pred_check
          %p139 = pneg %p55
        $region22: #{tpu_custom_call.1} parent=19 // pred_check_branch
          %141 = sbr.rel (%p139) target = $region24
        $region23: #{tpu_custom_call.1} parent=19 // pred_region
          %s142 = sand.u32 %s14, 1
          %s143 = scalar_lea.sflag [#allocation7], %s142
          %s144 = sand.u32 %s45, 1
          %s145 = smul.addr %s144, 128
          %s146 = scalar_lea.vmem [#allocation6], %s145
          %148 = vsyncadd %s143, 0
          %s149 = smul.addr %s14, 16
          %s150 = smul.addr %s149, 8
          %s151 = scalar_lea.hbm %s1, %s150
          %s152 = sshll.u32 %s151, 4
          %s153 = int_to_ptr.hbm [resolvable:$true] %s152
          %s154 = sshll.u32 %s146, 4
          %s155 = int_to_ptr.vmem [resolvable:$true] %s154
          %160 = dma.hbm_to_vmem [thread:$0]  %s153, 2048, %s155, %s143, 128, 128, 8
        $region24: #{tpu_custom_call.1} parent=19 // pred_fallthru
          _
        // Predicated region
        $region25: #{tpu_custom_call.1} parent=19 // pred_check
          %p161 = pneg %p81
        $region26: #{tpu_custom_call.1} parent=19 // pred_check_branch
          %163 = sbr.rel (%p161) target = $region28
        $region27: #{tpu_custom_call.1} parent=19 // pred_region
          %s164 = sand.u32 %s14, 1
          %s165 = scalar_lea.sflag [#allocation7], %s164
          %s166 = sand.u32 %s71, 1
          %s167 = smul.addr %s166, 2
          %s168 = scalar_lea.vmem [#allocation8], %s167
          %170 = vsyncadd %s165, 0
          %s171 = smul.addr %s14, 2
          %s172 = scalar_lea.hbm %s2, %s171
          %s174 = sshll.u32 %s172, 4
          %s175 = int_to_ptr.hbm [resolvable:$true] %s174
          %s176 = sshll.u32 %s168, 4
          %s177 = int_to_ptr.vmem [resolvable:$true] %s176
          %179 = dma.hbm_to_vmem [thread:$0]  %s175, 32, %s177, %s165
        $region28: #{tpu_custom_call.1} parent=19 // pred_fallthru
          _
      $region20: #{tpu_custom_call.1} parent=5 // pred_fallthru
        _
      %p180 = scmp.le.s32.totalorder 1, %s14
      %p181 = scmp.lt.s32.totalorder %s14, 4
      %p182 = pnand %p180, %p181
      %p183 = pneg %p182
      // Predicated region
      $region29: #{tpu_custom_call.1} parent=5 // pred_check
        _
      $region30: #{tpu_custom_call.1} parent=5 // pred_check_branch
        %185 = sbr.rel (%p182) target = $region32
      $region31: #{tpu_custom_call.1} parent=5 // pred_region
        %s186 = ssub.s32 %s14, 1
        // Predicated region
        $region33: #{tpu_custom_call.1} parent=31 // pred_check
          %p187 = pneg %p35
        $region34: #{tpu_custom_call.1} parent=31 // pred_check_branch
          %189 = sbr.rel (%p187) target = $region36
        $region35: #{tpu_custom_call.1} parent=31 // pred_region
          %191 = dma.done [#allocation4], 128
        $region36: #{tpu_custom_call.1} parent=31 // pred_fallthru
          _
        %s192 = sand.u32 %s19, 1
        %s193 = scalar_lea.sflag [#allocation7], %s192
        %s194 = sand.u32 %s48, 1
        %s195 = smul.addr %s194, 128
        %s196 = scalar_lea.vmem [#allocation6], %s195
        // Predicated region
        $region37: #{tpu_custom_call.1} parent=31 // pred_check
          %p197 = pneg %p61
        $region38: #{tpu_custom_call.1} parent=31 // pred_check_branch
          %199 = sbr.rel (%p197) target = $region40
        $region39: #{tpu_custom_call.1} parent=31 // pred_region
          %201 = dma.done %s193, 2048
        $region40: #{tpu_custom_call.1} parent=31 // pred_fallthru
          _
        %s202 = sand.u32 %s19, 1
        %s203 = scalar_lea.sflag [#allocation7], %s202
        %s204 = sand.u32 %s74, 1
        %s205 = smul.addr %s204, 2
        %s206 = scalar_lea.vmem [#allocation8], %s205
        // Predicated region
        $region41: #{tpu_custom_call.1} parent=31 // pred_check
          %p207 = pneg %p87
        $region42: #{tpu_custom_call.1} parent=31 // pred_check_branch
          %209 = sbr.rel (%p207) target = $region44
        $region43: #{tpu_custom_call.1} parent=31 // pred_region
          %211 = dma.done %s203, 32
        $region44: #{tpu_custom_call.1} parent=31 // pred_fallthru
          _
        %p212 = pneg %p35
        %p213 = pneg %p32
        %s214 = sand.u32 %s19, 1
        %s215 = scalar_lea.sflag [#allocation7], %s214
        %s216 = sand.u32 %s48, 1
        %s217 = smul.addr %s216, 128
        %s218 = scalar_lea.vmem [#allocation6], %s217
        %p219 = pneg %p61
        %p220 = pneg %p58
        %s221 = sand.u32 %s19, 1
        %s222 = scalar_lea.sflag [#allocation7], %s221
        %s223 = sand.u32 %s74, 1
        %s224 = smul.addr %s223, 2
        %s225 = scalar_lea.vmem [#allocation8], %s224
        %p226 = pneg %p87
        %p227 = pneg %p84
        %p228 = pneg %p108
        %p229 = pneg %p105
        %p230 = scmp.eq.s32.totalorder %s19, 0
        // Predicated region
        $region45: #{tpu_custom_call.1} parent=31 // pred_check
          %p231 = pneg %p230
        $region46: #{tpu_custom_call.1} parent=31 // pred_check_branch
          %233 = sbr.rel (%p231) target = $region48
        $region47: #{tpu_custom_call.1} parent=31 // pred_region
          %v234 = vld [vmem:[#allocation3] sm:$0xff]
          %235 = vst [vmem:[#allocation2] sm:$0xff] %v234
        $region48: #{tpu_custom_call.1} parent=31 // pred_fallthru
          _
        %v236 = vld [vmem:[#allocation2] sm:$0xff]
        %v237 = vld [vmem:[%s196] sm:$0xff]
        %v238 = vld [vmem:[%s196 + $0x8] sm:$0xff]
        %v239 = vld [vmem:[%s196 + $0x10] sm:$0xff]
        %v240 = vld [vmem:[%s196 + $0x18] sm:$0xff]
        %v241 = vld [vmem:[%s196 + $0x20] sm:$0xff]
        %v242 = vld [vmem:[%s196 + $0x28] sm:$0xff]
        %v243 = vld [vmem:[%s196 + $0x30] sm:$0xff]
        %v244 = vld [vmem:[%s196 + $0x38] sm:$0xff]
        %v245 = vld [vmem:[%s196 + $0x40] sm:$0xff]
        %v246 = vld [vmem:[%s196 + $0x48] sm:$0xff]
        %v247 = vld [vmem:[%s196 + $0x50] sm:$0xff]
        %v248 = vld [vmem:[%s196 + $0x58] sm:$0xff]
        %v249 = vld [vmem:[%s196 + $0x60] sm:$0xff]
        %v250 = vld [vmem:[%s196 + $0x68] sm:$0xff]
        %v251 = vld [vmem:[%s196 + $0x70] sm:$0xff]
        %v252 = vld [vmem:[%s196 + $0x78] sm:$0xff]
        %v253 = vld [vmem:[%s206] sm:$0x3]
        %254 = vmatpush.msra.mxu0 %v252
        %255 = vmatpush.msra.mxu0 %v251
        %256 = vmatpush.msra.mxu0 %v250
        %257 = vmatpush.msra.mxu0 %v249
        %258 = vmatpush.msra.mxu0 %v248
        %259 = vmatpush.msra.mxu0 %v247
        %260 = vmatpush.msra.mxu0 %v246
        %261 = vmatpush.msra.mxu0 %v245
        %262 = vmatpush.msra.mxu0 %v244
        %263 = vmatpush.msra.mxu0 %v243
        %264 = vmatpush.msra.mxu0 %v242
        %265 = vmatpush.msra.mxu0 %v241
        %266 = vmatpush.msra.mxu0 %v240
        %267 = vmatpush.msra.mxu0 %v239
        %268 = vmatpush.msra.mxu0 %v238
        %269 = vmatpush.msra.mxu0 %v237
        %270 = vmatmul.f32.gmra.mxu0 %v236
        %v271 = vpop.f32.mrf.mxu0
        %v272 = vadd.f32 0.0, %v271
        %273 = vdwg.mxu0
        %v274 = vrot.slane %v272, 4
        %v275 = vadd.f32 %v272, %v274
        %v276 = vrot.slane %v275, 2
        %v277 = vadd.f32 %v275, %v276
        %v278 = vrot.slane %v277, 1
        %v279 = vadd.f32 %v277, %v278
        %v280 = vrcp.pop 8.0
        %v281 = vmul.f32 8.0, %v280
        %v282 = vsub.f32 1.0, %v281
        %v283 = vmul.f32 %v280, %v282
        %v284 = vadd.f32 %v280, %v283
        %vm285 = vweird.f32 %v280
        %v286 = vsel %vm285, %v280, %v284
        %v287 = vmul.f32 %v279, %v286
        %v288 = vsub.f32 %v272, %v287
        %v289 = vmul.f32 %v288, %v288
        %v290 = vrot.slane %v289, 4
        %v291 = vadd.f32 %v289, %v290
        %v292 = vrot.slane %v291, 2
        %v293 = vadd.f32 %v291, %v292
        %v294 = vrot.slane %v293, 1
        %v295 = vadd.f32 %v293, %v294
        %v296 = vmul.f32 %v295, %v286
        %v297 = vadd.f32 %v296, 1e-05
        %v298 = vrsqrt.pop %v297
        %v299 = vmul.f32 %v298, %v297
        %v300 = vmul.f32 %v299, %v298
        %v301 = vmul.f32 0.5, %v300
        %v302 = vsub.f32 1.5, %v301
        %v303 = vmul.f32 %v298, %v302
        %vm304 = vweird.f32 %v297
        %vm305 = vweird.f32 %v298
        %vm306 = vmor %vm304, %vm305
        %v307 = vsel %vm306, %v298, %v303
        %v308 = vmul.f32 %v253, %v307
        %v309 = vmul.f32 %v287, %v308
        %v311 = vrot.slane %v309, 7
        %v313 = vsub.f32 %v253, %v311
        %v314 = vperm.slane %v308, 0
        %v315 = vmul.f32 %v272, %v314
        %v316 = vperm.slane %v313, 1
        %v317 = vadd.f32 %v315, %v316
        %p318 = scmp.lt.s32.totalorder %s19, 2
        // Predicated region
        $region49: #{tpu_custom_call.1} parent=31 // pred_check
          %p319 = pneg %p318
        $region50: #{tpu_custom_call.1} parent=31 // pred_check_branch
          %321 = sbr.rel (%p319) target = $region52
        $region51: #{tpu_custom_call.1} parent=31 // pred_region
          %vm322 = vcmp.ge.f32.partialorder %v317, 0.0
          %v323 = vmul.f32 %v317, 0.05
          %v324 = vsel %vm322, %v317, %v323
          %325 = vst [vmem:[#allocation2] sm:$0xff] %v324
        $region52: #{tpu_custom_call.1} parent=31 // pred_fallthru
          _
        %p326 = scmp.eq.s32.totalorder %s19, 2
        // Predicated region
        $region53: #{tpu_custom_call.1} parent=31 // pred_check
          %p327 = pneg %p326
        $region54: #{tpu_custom_call.1} parent=31 // pred_check_branch
          %329 = sbr.rel (%p327) target = $region56
        $region55: #{tpu_custom_call.1} parent=31 // pred_region
          %330 = vst [vmem:[#allocation9] sm:$0xff] %v317
        $region56: #{tpu_custom_call.1} parent=31 // pred_fallthru
          _
        // Predicated region
        $region57: #{tpu_custom_call.1} parent=31 // pred_check
          %p331 = pneg %p105
        $region58: #{tpu_custom_call.1} parent=31 // pred_check_branch
          %333 = sbr.rel (%p331) target = $region60
        $region59: #{tpu_custom_call.1} parent=31 // pred_region
          %335 = vsyncadd [#allocation5], 0
          %s337 = sshll.u32 [#allocation9], 4
          %s338 = int_to_ptr.vmem [resolvable:$true] %s337
          %s339 = sshll.u32 %s3, 4
          %s340 = int_to_ptr.hbm [resolvable:$true] %s339
          %342 = dma.vmem_to_hbm [thread:$0]  %s338, 128, %s340, [#allocation5]
        $region60: #{tpu_custom_call.1} parent=31 // pred_fallthru
          _
        // Predicated region
        $region61: #{tpu_custom_call.1} parent=31 // pred_check
          %p343 = pneg %p105
        $region62: #{tpu_custom_call.1} parent=31 // pred_check_branch
          %345 = sbr.rel (%p343) target = $region64
        $region63: #{tpu_custom_call.1} parent=31 // pred_region
          %347 = dma.done [#allocation5], 128
        $region64: #{tpu_custom_call.1} parent=31 // pred_fallthru
          _
      $region32: #{tpu_custom_call.1} parent=5 // pred_fallthru
        _
      %p348 = scmp.le.s32.totalorder 2, %s14
      // Predicated region
      $region65: #{tpu_custom_call.1} parent=5 // pred_check
        %p349 = pneg %p348
      $region66: #{tpu_custom_call.1} parent=5 // pred_check_branch
        %351 = sbr.rel (%p349) target = $region68
      $region67: #{tpu_custom_call.1} parent=5 // pred_region
        %s352 = ssub.s32 %s14, 2
      $region68: #{tpu_custom_call.1} parent=5 // pred_fallthru
        _
    $region6: #{tpu_custom_call.1} parent=1 // loop_footer
      %s18 = sadd.s32 1, %s14
    $region7: #{tpu_custom_call.1} parent=1 // loop_footer_branch
      %13 = sbr.rel target = $region3
    $region8: #{tpu_custom_call.1} parent=1 // loop_exit
      _
    %353 = vsyncpa [#allocation4], 1
    %s354 = scalar_lea.sflag [#allocation4], 1
    %355 = vsyncpa %s354, 1
    %356 = vsyncpa [#allocation7], 1
    %s357 = scalar_lea.sflag [#allocation7], 1
    %358 = vsyncpa %s357, 1
    %359 = vsyncpa [#allocation5], 1
    %s360 = scalar_lea.sflag [#allocation5], 1
    %361 = vsyncpa %s360, 1

</llo_original>
